<compile_context>
chip_gen: v7x
topology: tpu7x:2x2x1
jax: 0.10.0
libtpu: 0.0.40
codegen_flags: <defaults>
</compile_context>

<pallas_src>
import functools

import jax
import jax.numpy as jnp
from jax import lax
from jax.experimental import pallas as pl
from jax.experimental.pallas import tpu as pltpu


def bilinear_kernel(xt_ref, yt_ref, uw_ref, ub_ref, vw_ref, vb_ref,
                    pw_ref, pb_ref, o_ref, *, bb, d_model, activation):
    """One grid step processes a group of `bb` batch elements.

    xt_ref : (bb*d_model, 200) bf16  -- x[b].T stacked over the batch group
    yt_ref : (bb*d_model, 20)  bf16  -- y[b].T stacked over the batch group
    uw_ref : (200, 200) bf16 [out_ch, in_ch]      ub_ref : (1, 200) f32
    vw_ref : (200, 20)  bf16 [out_ch, in_ch]      vb_ref : (1, 200) f32
    pw_ref : (out_f, d_model) bf16 (untransposed) pb_ref : (out_f, 1) f32
    o_ref  : (bb, out_f, 200)  -- transposed, lane-dense output
    """
    nt = (((1,), (1,)), ((), ()))  # contract the last (in-channel) dims: X @ W^T
    # A^T = x^T @ Uw^T, B^T = y^T @ Vw^T : bf16 MXU matmuls, f32 accumulation.
    at = lax.dot_general(xt_ref[...], uw_ref[...], nt,
                         preferred_element_type=jnp.float32) + ub_ref[...]
    bt = lax.dot_general(yt_ref[...], vw_ref[...], nt,
                         preferred_element_type=jnp.float32) + vb_ref[...]
    zt = at * bt                                 # f32 elementwise on the VPU
    if activation is not None:                   # module's optional activate_fn hook
        zt = activation(zt)
    zt = zt.astype(jnp.bfloat16)                 # bf16 operand for the P matmul

    pw = pw_ref[...]                             # hoisted out of the static loop
    pb = pb_ref[...]
    for b in range(bb):                          # static unroll; bb is small
        # (d_model, 200) sublane-aligned slice of this batch group (d_model % 8 == 0).
        ztb = zt[b * d_model:(b + 1) * d_model, :]
        # (out_f, d_model) @ (d_model, 200) -> (out_f, 200): lane-dense result.
        out_t = jnp.dot(pw, ztb, preferred_element_type=jnp.float32) + pb
        o_ref[b] = out_t.astype(o_ref.dtype)     # (out_f, 200) lane-dense store


def bilinear_forward(x, y, params, *, activation=None, block_batch=None):
    """x: (B, 200, d_model), y: (B, 20, d_model) -> (B, 200, out_feature)."""
    uw, ub, vw, vb, pw, pb = (params["Uw"], params["Ub"], params["Vw"],
                              params["Vb"], params["Pw"], params["Pb"])
    B, C_u, d_model = x.shape
    C_v = y.shape[1]
    out_f = pw.shape[0]
    assert d_model % 8 == 0, "d_model must be a multiple of 8 for clean sublane tiling"

    if block_batch is None:
        # Rows fed to the U/V matmuls per step = bb * d_model.  Aim for a block big
        # enough to amortize the ~0.35us per-step overhead and fill the MXU M dim
        # (up to ~512 rows), while keeping grid length >= 2 when the batch allows
        # it so both TensorCores of a dual-core chip get a parallel step each.
        bb = max(1, min(B, 512 // max(1, d_model)))
        if B >= 2:
            bb = max(1, min(bb, B // 2))
        while B % bb != 0:
            bb -= 1
    else:
        bb = block_batch
        assert B % bb == 0
    grid = (B // bb,)

    # Layout plumbing in the wrapper (cheap XLA reshapes/casts, not compute):
    #  - activations transposed so the 200-channel dim is the lane dim
    #  - matmul operands cast to bf16; biases / accumulation stay f32
    xt = x.transpose(0, 2, 1).reshape(B * d_model, C_u).astype(jnp.bfloat16)
    yt = y.transpose(0, 2, 1).reshape(B * d_model, C_v).astype(jnp.bfloat16)
    uw2 = uw[:, :, 0].astype(jnp.bfloat16)            # (200, 200)
    vw2 = vw[:, :, 0].astype(jnp.bfloat16)            # (200, 20)
    ub2 = ub.reshape(1, C_u).astype(jnp.float32)      # (1, 200)
    vb2 = vb.reshape(1, C_u).astype(jnp.float32)      # (1, 200)
    pwb = pw.astype(jnp.bfloat16)                     # (out_f, d_model), untransposed
    pb2 = pb.reshape(out_f, 1).astype(jnp.float32)    # (out_f, 1)

    kernel = functools.partial(bilinear_kernel, bb=bb, d_model=d_model,
                               activation=activation)

    grid_spec = pltpu.PrefetchScalarGridSpec(
        num_scalar_prefetch=0,
        grid=grid,
        in_specs=[
            pl.BlockSpec((bb * d_model, C_u), lambda i: (i, 0)),   # x^T, batch-packed rows
            pl.BlockSpec((bb * d_model, C_v), lambda i: (i, 0)),   # y^T, batch-packed rows
            pl.BlockSpec((C_u, C_u), lambda i: (0, 0)),            # Uw
            pl.BlockSpec((1, C_u), lambda i: (0, 0)),              # Ub (row)
            pl.BlockSpec((C_u, C_v), lambda i: (0, 0)),            # Vw
            pl.BlockSpec((1, C_u), lambda i: (0, 0)),              # Vb (row)
            pl.BlockSpec((out_f, d_model), lambda i: (0, 0)),      # Pw
            pl.BlockSpec((out_f, 1), lambda i: (0, 0)),            # Pb (col)
        ],
        out_specs=pl.BlockSpec((bb, out_f, C_u), lambda i: (i, 0, 0)),
    )

    out_t = pl.pallas_call(
        kernel,
        out_shape=jax.ShapeDtypeStruct((B, out_f, C_u), x.dtype),
        grid_spec=grid_spec,
        compiler_params=pltpu.CompilerParams(
            dimension_semantics=("parallel",)),
    )(xt, yt, uw2, ub2, vw2, vb2, pwb, pb2)

    # (B, out_f, 200) -> (B, 200, out_f)
    return out_t.transpose(0, 2, 1)


def init_params(key, in_features1, in_features2, out_feature):
    d_model = min(in_features1, in_features2)
    ks = jax.random.split(key, 6)

    # Deterministic synthetic init (PyTorch-like small uniform scale).
    def u(k, shape, fan_in):
        bound = 1.0 / jnp.sqrt(fan_in)
        return jax.random.uniform(k, shape, jnp.float32, -bound, bound)

    params = {
        "Uw": u(ks[0], (200, 200, 1), 200.0),
        "Ub": u(ks[1], (200,), 200.0),
        "Vw": u(ks[2], (200, 20, 1), 20.0),
        "Vb": u(ks[3], (200,), 20.0),
        "Pw": u(ks[4], (out_feature, d_model), float(d_model)),
        "Pb": u(ks[5], (out_feature,), float(d_model)),
    }
    return params, d_model


def reference_forward(x, y, params, activate_fn=None):
    uw = params["Uw"][:, :, 0]
    vw = params["Vw"][:, :, 0]
    a = jnp.einsum("oc,bcl->bol", uw, x) + params["Ub"][None, :, None]
    b = jnp.einsum("oc,bcl->bol", vw, y) + params["Vb"][None, :, None]
    z = a * b
    if activate_fn is not None:
        z = activate_fn(z)
    return jnp.einsum("bol,fl->bof", z, params["Pw"]) + params["Pb"][None, None, :]


if __name__ == "__main__":
    # Forward-consistent shapes: L (sequence length of the Conv1d inputs) must
    # equal d_model = min(in_features1, in_features2) for P to apply.
    in_features1, in_features2, out_feature = 128, 64, 16
    B = 4  # with d_model=64 -> bb=2 batches per step, grid=(2,) parallel steps

    key = jax.random.PRNGKey(0)
    pkey, xkey, ykey = jax.random.split(key, 3)
    params, d_model = init_params(pkey, in_features1, in_features2, out_feature)

    x = jax.random.normal(xkey, (B, 200, d_model), jnp.float32)
    y = jax.random.normal(ykey, (B, 20, d_model), jnp.float32)

    out = jax.block_until_ready(bilinear_forward(x, y, params))
    ref = reference_forward(x, y, params)
    assert out.shape == (B, 200, out_feature)
    # bf16 matmul operands vs f32 einsum reference -> loose tolerances.
    assert jnp.allclose(out, ref, rtol=5e-2, atol=5e-2)

    # Exercise the module's optional activate_fn hook as well.
    out_act = jax.block_until_ready(bilinear_forward(x, y, params, activation=jnp.tanh))
    ref_act = reference_forward(x, y, params, activate_fn=jnp.tanh)
    assert jnp.allclose(out_act, ref_act, rtol=5e-2, atol=5e-2)

    print("KERNEL_OK")
</pallas_src>

<mosaic_0001>
module attributes {stable_mosaic.version = 11 : i64} {
  func.func @bilinear_kernel(%arg0: i32, %arg1: memref<128x200xbf16, #tpu.memory_space<vmem>>, %arg2: memref<128x20xbf16, #tpu.memory_space<vmem>>, %arg3: memref<200x200xbf16, #tpu.memory_space<vmem>>, %arg4: memref<1x200xf32, #tpu.memory_space<vmem>>, %arg5: memref<200x20xbf16, #tpu.memory_space<vmem>>, %arg6: memref<1x200xf32, #tpu.memory_space<vmem>>, %arg7: memref<16x64xbf16, #tpu.memory_space<vmem>>, %arg8: memref<16x1xf32, #tpu.memory_space<vmem>>, %arg9: memref<2x16x200xf32, #tpu.memory_space<vmem>>) attributes {dimension_semantics = [#tpu.dimension_semantics<parallel>], iteration_bounds = array<i64: 2>, scalar_prefetch = 0 : i64, scratch_operands = 0 : i64, tpu.core_type = #tpu.core_type<tc>, window_params = [{transform_indices = @transform_0, window_bounds = array<i64: 128, 200>}, {transform_indices = @transform_1, window_bounds = array<i64: 128, 20>}, {pipeline_mode = #tpu.pipeline_mode<synchronous>, transform_indices = @transform_2, window_bounds = array<i64: 200, 200>}, {pipeline_mode = #tpu.pipeline_mode<synchronous>, transform_indices = @transform_3, window_bounds = array<i64: 1, 200>}, {pipeline_mode = #tpu.pipeline_mode<synchronous>, transform_indices = @transform_4, window_bounds = array<i64: 200, 20>}, {pipeline_mode = #tpu.pipeline_mode<synchronous>, transform_indices = @transform_5, window_bounds = array<i64: 1, 200>}, {pipeline_mode = #tpu.pipeline_mode<synchronous>, transform_indices = @transform_6, window_bounds = array<i64: 16, 64>}, {pipeline_mode = #tpu.pipeline_mode<synchronous>, transform_indices = @transform_7, window_bounds = array<i64: 16, 1>}, {transform_indices = @transform_8, window_bounds = array<i64: 2, 16, 200>}]} {
    %c0 = arith.constant 0 : index
    %c0_0 = arith.constant 0 : index
    %0 = vector.load %arg1[%c0, %c0_0] : memref<128x200xbf16, #tpu.memory_space<vmem>>, vector<128x200xbf16>
    %c0_1 = arith.constant 0 : index
    %c0_2 = arith.constant 0 : index
    %1 = vector.load %arg3[%c0_1, %c0_2] : memref<200x200xbf16, #tpu.memory_space<vmem>>, vector<200x200xbf16>
    %cst = arith.constant dense<0.000000e+00> : vector<128x200xf32>
    %2 = tpu.matmul %0, %1, %cst {dimension_numbers = #tpu.dot_dimension_numbers<[1], [1], [0], [0], [0, 0, 1, 0], [], []>} : vector<128x200xbf16>, vector<200x200xbf16>, vector<128x200xf32> -> vector<128x200xf32>
    %c0_3 = arith.constant 0 : index
    %c0_4 = arith.constant 0 : index
    %3 = vector.load %arg4[%c0_3, %c0_4] : memref<1x200xf32, #tpu.memory_space<vmem>>, vector<1x200xf32>
    %4 = vector.broadcast %3 : vector<1x200xf32> to vector<128x200xf32>
    %5 = arith.addf %2, %4 : vector<128x200xf32>
    %c0_5 = arith.constant 0 : index
    %c0_6 = arith.constant 0 : index
    %6 = vector.load %arg2[%c0_5, %c0_6] : memref<128x20xbf16, #tpu.memory_space<vmem>>, vector<128x20xbf16>
    %c0_7 = arith.constant 0 : index
    %c0_8 = arith.constant 0 : index
    %7 = vector.load %arg5[%c0_7, %c0_8] : memref<200x20xbf16, #tpu.memory_space<vmem>>, vector<200x20xbf16>
    %cst_9 = arith.constant dense<0.000000e+00> : vector<128x200xf32>
    %8 = tpu.matmul %6, %7, %cst_9 {dimension_numbers = #tpu.dot_dimension_numbers<[1], [1], [0], [0], [0, 0, 1, 0], [], []>} : vector<128x20xbf16>, vector<200x20xbf16>, vector<128x200xf32> -> vector<128x200xf32>
    %c0_10 = arith.constant 0 : index
    %c0_11 = arith.constant 0 : index
    %9 = vector.load %arg6[%c0_10, %c0_11] : memref<1x200xf32, #tpu.memory_space<vmem>>, vector<1x200xf32>
    %10 = vector.broadcast %9 : vector<1x200xf32> to vector<128x200xf32>
    %11 = arith.addf %8, %10 : vector<128x200xf32>
    %12 = arith.mulf %5, %11 : vector<128x200xf32>
    %13 = arith.truncf %12 : vector<128x200xf32> to vector<128x200xbf16>
    %c0_12 = arith.constant 0 : index
    %c0_13 = arith.constant 0 : index
    %14 = vector.load %arg7[%c0_12, %c0_13] : memref<16x64xbf16, #tpu.memory_space<vmem>>, vector<16x64xbf16>
    %c0_14 = arith.constant 0 : index
    %c0_15 = arith.constant 0 : index
    %15 = vector.load %arg8[%c0_14, %c0_15] : memref<16x1xf32, #tpu.memory_space<vmem>>, vector<16x1xf32>
    %16 = vector.extract_strided_slice %13 {offsets = [0, 0], sizes = [64, 200], strides = [1, 1]} : vector<128x200xbf16> to vector<64x200xbf16>
    %cst_16 = arith.constant dense<0.000000e+00> : vector<16x200xf32>
    %17 = tpu.matmul %14, %16, %cst_16 {dimension_numbers = #tpu.dot_dimension_numbers<[1], [0], [0], [1], [0, 0, 1, 1], [], []>} : vector<16x64xbf16>, vector<64x200xbf16>, vector<16x200xf32> -> vector<16x200xf32>
    %18 = vector.broadcast %15 : vector<16x1xf32> to vector<16x200xf32>
    %19 = arith.addf %17, %18 : vector<16x200xf32>
    %c0_17 = arith.constant 0 : index
    %c0_18 = arith.constant 0 : index
    %c0_19 = arith.constant 0 : index
    %20 = vector.load %arg9[%c0_17, %c0_18, %c0_19] : memref<2x16x200xf32, #tpu.memory_space<vmem>>, vector<1x16x200xf32>
    %21 = vector.shape_cast %20 : vector<1x16x200xf32> to vector<16x200xf32>
    %22 = vector.shape_cast %19 : vector<16x200xf32> to vector<1x16x200xf32>
    tpu.vector_store %arg9[%c0_17, %c0_18, %c0_19], %22 {strides = array<i32>} : memref<2x16x200xf32, #tpu.memory_space<vmem>>, vector<1x16x200xf32>,
    %23 = vector.extract_strided_slice %13 {offsets = [64, 0], sizes = [64, 200], strides = [1, 1]} : vector<128x200xbf16> to vector<64x200xbf16>
    %cst_20 = arith.constant dense<0.000000e+00> : vector<16x200xf32>
    %24 = tpu.matmul %14, %23, %cst_20 {dimension_numbers = #tpu.dot_dimension_numbers<[1], [0], [0], [1], [0, 0, 1, 1], [], []>} : vector<16x64xbf16>, vector<64x200xbf16>, vector<16x200xf32> -> vector<16x200xf32>
    %25 = vector.broadcast %15 : vector<16x1xf32> to vector<16x200xf32>
    %26 = arith.addf %24, %25 : vector<16x200xf32>
    %c1 = arith.constant 1 : index
    %c0_21 = arith.constant 0 : index
    %c0_22 = arith.constant 0 : index
    %27 = vector.load %arg9[%c1, %c0_21, %c0_22] : memref<2x16x200xf32, #tpu.memory_space<vmem>>, vector<1x16x200xf32>
    %28 = vector.shape_cast %27 : vector<1x16x200xf32> to vector<16x200xf32>
    %29 = vector.shape_cast %26 : vector<16x200xf32> to vector<1x16x200xf32>
    tpu.vector_store %arg9[%c1, %c0_21, %c0_22], %29 {strides = array<i32>} : memref<2x16x200xf32, #tpu.memory_space<vmem>>, vector<1x16x200xf32>,
    return
  }
  func.func @transform_0(%arg0: i32) -> (i32, i32) {
    %c0_i32 = arith.constant 0 : i32
    %c0_i32_0 = arith.constant 0 : i32
    return %arg0, %c0_i32 : i32, i32
  }
  func.func @transform_1(%arg0: i32) -> (i32, i32) {
    %c0_i32 = arith.constant 0 : i32
    %c0_i32_0 = arith.constant 0 : i32
    return %arg0, %c0_i32 : i32, i32
  }
  func.func @transform_2(%arg0: i32) -> (i32, i32) {
    %c0_i32 = arith.constant 0 : i32
    %c0_i32_0 = arith.constant 0 : i32
    %c0_i32_1 = arith.constant 0 : i32
    return %c0_i32, %c0_i32_0 : i32, i32
  }
  func.func @transform_3(%arg0: i32) -> (i32, i32) {
    %c0_i32 = arith.constant 0 : i32
    %c0_i32_0 = arith.constant 0 : i32
    %c0_i32_1 = arith.constant 0 : i32
    return %c0_i32, %c0_i32_0 : i32, i32
  }
  func.func @transform_4(%arg0: i32) -> (i32, i32) {
    %c0_i32 = arith.constant 0 : i32
    %c0_i32_0 = arith.constant 0 : i32
    %c0_i32_1 = arith.constant 0 : i32
    return %c0_i32, %c0_i32_0 : i32, i32
  }
  func.func @transform_5(%arg0: i32) -> (i32, i32) {
    %c0_i32 = arith.constant 0 : i32
    %c0_i32_0 = arith.constant 0 : i32
    %c0_i32_1 = arith.constant 0 : i32
    return %c0_i32, %c0_i32_0 : i32, i32
  }
  func.func @transform_6(%arg0: i32) -> (i32, i32) {
    %c0_i32 = arith.constant 0 : i32
    %c0_i32_0 = arith.constant 0 : i32
    %c0_i32_1 = arith.constant 0 : i32
    return %c0_i32, %c0_i32_0 : i32, i32
  }
  func.func @transform_7(%arg0: i32) -> (i32, i32) {
    %c0_i32 = arith.constant 0 : i32
    %c0_i32_0 = arith.constant 0 : i32
    %c0_i32_1 = arith.constant 0 : i32
    return %c0_i32, %c0_i32_0 : i32, i32
  }
  func.func @transform_8(%arg0: i32) -> (i32, i32, i32) {
    %c0_i32 = arith.constant 0 : i32
    %c0_i32_0 = arith.constant 0 : i32
    %c0_i32_1 = arith.constant 0 : i32
    return %arg0, %c0_i32, %c0_i32_0 : i32, i32, i32
  }
}

</mosaic_0001>

<llo_original>
// kernel: tpu_custom_call.1
$region0: #{tpu_custom_call.1}
  #allocation0 [shape = 'u32[]', space=smem, size = 0x4, offset = 0x4, fixed_abs, tag = 'smem constant byte address 0x4 - core index']
  #allocation1 [shape = 'u32[144,128]{1,0:T(1,128)}', space=vmem, size = 0x12000, scoped, tag = 'internal scratch']
  %s0 = inlined_call_operand.vmem [shape: bf16[256,200], index: 0, kind: input, shape index: {}]
  %s1 = inlined_call_operand.vmem [shape: bf16[256,20], index: 1, kind: input, shape index: {}]
  %s2 = inlined_call_operand.vmem [shape: bf16[200,200], index: 2, kind: input, shape index: {}]
  %s3 = inlined_call_operand.vmem [shape: f32[1,200], index: 3, kind: input, shape index: {}]
  %s4 = inlined_call_operand.vmem [shape: bf16[200,20], index: 4, kind: input, shape index: {}]
  %s5 = inlined_call_operand.vmem [shape: f32[1,200], index: 5, kind: input, shape index: {}]
  %s6 = inlined_call_operand.vmem [shape: bf16[16,64], index: 6, kind: input, shape index: {}]
  %s7 = inlined_call_operand.vmem [shape: f32[16,1], index: 7, kind: input, shape index: {}]
  %s8 = inlined_call_operand.hbm [shape: f32[4,16,200], index: 8, kind: output, shape index: {}]
  %s9 = sld [smem:[#allocation0]]
  $region65: #{tpu_custom_call.1} parent=0
    _
  %s11 = ssub.s32 1, %s9
  %s12 = scalar_select 0, %s11, %s9
  $region1: #{tpu_custom_call.1} parent=0
    #allocation2 [shape = 'u8[65536]{0}', space=vmem, size = 0x10000, scoped, tag = 'output window, operand 0']
    #allocation3 [shape = 's32[2]{0}', space=sflag, size = 0x8, scoped, tag = 'scoped memory for tpu_custom_call.1']
    %13 = vsyncpa [#allocation3], 0
    %s14 = scalar_lea.sflag [#allocation3], 1
    %15 = vsyncpa %s14, 0
    loop: start=0, step=1, limit=4
    $region2: #{tpu_custom_call.1} parent=1 // loop_pre_header
      _
    $region3: #{tpu_custom_call.1} parent=1 // loop_header
      %s17 = sphi 0, %s21
      %p18 = scmp.ge.s32.totalorder %s17, 4
      %s27 = sphi 0, %s29
      %s30 = sphi 0, %s27
      %s31 = sphi 0, %s30
      %s47 = sphi 0, %s31
      %s53 = sphi 0, %s55
      %s56 = sphi 0, %s53
      %s57 = sphi 0, %s56
      %s73 = sphi 0, %s57
      %s77 = sphi 0, %s77
      %s79 = sphi 0, %s77
      %s80 = sphi 0, %s79
      %s94 = sphi 0, %s80
      %s98 = sphi 0, %s98
      %s100 = sphi 0, %s98
      %s101 = sphi 0, %s100
      %s115 = sphi 0, %s101
      %s119 = sphi 0, %s119
      %s121 = sphi 0, %s119
      %s122 = sphi 0, %s121
      %s136 = sphi 0, %s122
      %s140 = sphi 0, %s140
      %s142 = sphi 0, %s140
      %s143 = sphi 0, %s142
      %s157 = sphi 0, %s143
      %s161 = sphi 0, %s161
      %s163 = sphi 0, %s161
      %s164 = sphi 0, %s163
      %s178 = sphi 0, %s164
      %s182 = sphi 0, %s182
      %s184 = sphi 0, %s182
      %s185 = sphi 0, %s184
      %s199 = sphi 0, %s185
      %s205 = sphi 0, %s207
      %s208 = sphi 0, %s205
      %s209 = sphi 0, %s208
      %s225 = sphi 0, %s209
    $region4: #{tpu_custom_call.1} parent=1 // loop_header_branch
      %20 = sbr.rel (%p18) target = $region8
    $region5: #{tpu_custom_call.1} parent=1 // loop_body
      %s22 = ssub.s32 %s17, 1
      %s23 = ssub.s32 %s17, 2
      %s24 = sadd.s32 %s17, 1
      %s25 = ssub.s32 %s17, %s24
      %p26 = scmp.eq.s32.totalorder %s25, 0
      %s28 = sadd.s32 %s27, 1
      %s29 = scalar_select %p26, %s27, %s28
      %p32 = pneg %p26
      %p33 = scmp.eq.s32.totalorder %s17, 1
      %p34 = por %p32, %p33
      %p35 = scmp.ne.s32.totalorder %s27, %s30
      %p36 = scmp.eq.s32.totalorder %s17, 0
      %p37 = por %p35, %p36
      %p38 = scmp.ne.s32.totalorder %s27, %s30
      %p39 = scmp.eq.s32.totalorder %s22, 1
      %p40 = por %p38, %p39
      %p41 = scmp.ne.s32.totalorder %s30, %s31
      %p42 = scmp.eq.s32.totalorder %s22, 0
      %p43 = por %p41, %p42
      %p44 = scmp.ne.s32.totalorder %s30, %s31
      %p45 = scmp.eq.s32.totalorder %s23, 1
      %p46 = por %p44, %p45
      %p48 = scmp.ne.s32.totalorder %s31, %s47
      %p49 = scmp.eq.s32.totalorder %s23, 0
      %p50 = por %p48, %p49
      %s51 = ssub.s32 %s17, %s24
      %p52 = scmp.eq.s32.totalorder %s51, 0
      %s54 = sadd.s32 %s53, 1
      %s55 = scalar_select %p52, %s53, %s54
      %p58 = pneg %p52
      %p59 = scmp.eq.s32.totalorder %s17, 1
      %p60 = por %p58, %p59
      %p61 = scmp.ne.s32.totalorder %s53, %s56
      %p62 = scmp.eq.s32.totalorder %s17, 0
      %p63 = por %p61, %p62
      %p64 = scmp.ne.s32.totalorder %s53, %s56
      %p65 = scmp.eq.s32.totalorder %s22, 1
      %p66 = por %p64, %p65
      %p67 = scmp.ne.s32.totalorder %s56, %s57
      %p68 = scmp.eq.s32.totalorder %s22, 0
      %p69 = por %p67, %p68
      %p70 = scmp.ne.s32.totalorder %s56, %s57
      %p71 = scmp.eq.s32.totalorder %s23, 1
      %p72 = por %p70, %p71
      %p74 = scmp.ne.s32.totalorder %s57, %s73
      %p75 = scmp.eq.s32.totalorder %s23, 0
      %p76 = por %p74, %p75
      %s78 = sadd.s32 %s77, 1
      %p81 = scmp.eq.s32.totalorder %s17, 1
      %p82 = scmp.ne.s32.totalorder %s77, %s79
      %p83 = scmp.eq.s32.totalorder %s17, 0
      %p84 = por %p82, %p83
      %p85 = scmp.ne.s32.totalorder %s77, %s79
      %p86 = scmp.eq.s32.totalorder %s22, 1
      %p87 = por %p85, %p86
      %p88 = scmp.ne.s32.totalorder %s79, %s80
      %p89 = scmp.eq.s32.totalorder %s22, 0
      %p90 = por %p88, %p89
      %p91 = scmp.ne.s32.totalorder %s79, %s80
      %p92 = scmp.eq.s32.totalorder %s23, 1
      %p93 = por %p91, %p92
      %p95 = scmp.ne.s32.totalorder %s80, %s94
      %p96 = scmp.eq.s32.totalorder %s23, 0
      %p97 = por %p95, %p96
      %s99 = sadd.s32 %s98, 1
      %p102 = scmp.eq.s32.totalorder %s17, 1
      %p103 = scmp.ne.s32.totalorder %s98, %s100
      %p104 = scmp.eq.s32.totalorder %s17, 0
      %p105 = por %p103, %p104
      %p106 = scmp.ne.s32.totalorder %s98, %s100
      %p107 = scmp.eq.s32.totalorder %s22, 1
      %p108 = por %p106, %p107
      %p109 = scmp.ne.s32.totalorder %s100, %s101
      %p110 = scmp.eq.s32.totalorder %s22, 0
      %p111 = por %p109, %p110
      %p112 = scmp.ne.s32.totalorder %s100, %s101
      %p113 = scmp.eq.s32.totalorder %s23, 1
      %p114 = por %p112, %p113
      %p116 = scmp.ne.s32.totalorder %s101, %s115
      %p117 = scmp.eq.s32.totalorder %s23, 0
      %p118 = por %p116, %p117
      %s120 = sadd.s32 %s119, 1
      %p123 = scmp.eq.s32.totalorder %s17, 1
      %p124 = scmp.ne.s32.totalorder %s119, %s121
      %p125 = scmp.eq.s32.totalorder %s17, 0
      %p126 = por %p124, %p125
      %p127 = scmp.ne.s32.totalorder %s119, %s121
      %p128 = scmp.eq.s32.totalorder %s22, 1
      %p129 = por %p127, %p128
      %p130 = scmp.ne.s32.totalorder %s121, %s122
      %p131 = scmp.eq.s32.totalorder %s22, 0
      %p132 = por %p130, %p131
      %p133 = scmp.ne.s32.totalorder %s121, %s122
      %p134 = scmp.eq.s32.totalorder %s23, 1
      %p135 = por %p133, %p134
      %p137 = scmp.ne.s32.totalorder %s122, %s136
      %p138 = scmp.eq.s32.totalorder %s23, 0
      %p139 = por %p137, %p138
      %s141 = sadd.s32 %s140, 1
      %p144 = scmp.eq.s32.totalorder %s17, 1
      %p145 = scmp.ne.s32.totalorder %s140, %s142
      %p146 = scmp.eq.s32.totalorder %s17, 0
      %p147 = por %p145, %p146
      %p148 = scmp.ne.s32.totalorder %s140, %s142
      %p149 = scmp.eq.s32.totalorder %s22, 1
      %p150 = por %p148, %p149
      %p151 = scmp.ne.s32.totalorder %s142, %s143
      %p152 = scmp.eq.s32.totalorder %s22, 0
      %p153 = por %p151, %p152
      %p154 = scmp.ne.s32.totalorder %s142, %s143
      %p155 = scmp.eq.s32.totalorder %s23, 1
      %p156 = por %p154, %p155
      %p158 = scmp.ne.s32.totalorder %s143, %s157
      %p159 = scmp.eq.s32.totalorder %s23, 0
      %p160 = por %p158, %p159
      %s162 = sadd.s32 %s161, 1
      %p165 = scmp.eq.s32.totalorder %s17, 1
      %p166 = scmp.ne.s32.totalorder %s161, %s163
      %p167 = scmp.eq.s32.totalorder %s17, 0
      %p168 = por %p166, %p167
      %p169 = scmp.ne.s32.totalorder %s161, %s163
      %p170 = scmp.eq.s32.totalorder %s22, 1
      %p171 = por %p169, %p170
      %p172 = scmp.ne.s32.totalorder %s163, %s164
      %p173 = scmp.eq.s32.totalorder %s22, 0
      %p174 = por %p172, %p173
      %p175 = scmp.ne.s32.totalorder %s163, %s164
      %p176 = scmp.eq.s32.totalorder %s23, 1
      %p177 = por %p175, %p176
      %p179 = scmp.ne.s32.totalorder %s164, %s178
      %p180 = scmp.eq.s32.totalorder %s23, 0
      %p181 = por %p179, %p180
      %s183 = sadd.s32 %s182, 1
      %p186 = scmp.eq.s32.totalorder %s17, 1
      %p187 = scmp.ne.s32.totalorder %s182, %s184
      %p188 = scmp.eq.s32.totalorder %s17, 0
      %p189 = por %p187, %p188
      %p190 = scmp.ne.s32.totalorder %s182, %s184
      %p191 = scmp.eq.s32.totalorder %s22, 1
      %p192 = por %p190, %p191
      %p193 = scmp.ne.s32.totalorder %s184, %s185
      %p194 = scmp.eq.s32.totalorder %s22, 0
      %p195 = por %p193, %p194
      %p196 = scmp.ne.s32.totalorder %s184, %s185
      %p197 = scmp.eq.s32.totalorder %s23, 1
      %p198 = por %p196, %p197
      %p200 = scmp.ne.s32.totalorder %s185, %s199
      %p201 = scmp.eq.s32.totalorder %s23, 0
      %p202 = por %p200, %p201
      %s203 = ssub.s32 %s17, %s24
      %p204 = scmp.eq.s32.totalorder %s203, 0
      %s206 = sadd.s32 %s205, 1
      %s207 = scalar_select %p204, %s205, %s206
      %p210 = pneg %p204
      %p211 = scmp.eq.s32.totalorder %s17, 1
      %p212 = por %p210, %p211
      %p213 = scmp.ne.s32.totalorder %s205, %s208
      %p214 = scmp.eq.s32.totalorder %s17, 0
      %p215 = por %p213, %p214
      %p216 = scmp.ne.s32.totalorder %s205, %s208
      %p217 = scmp.eq.s32.totalorder %s22, 1
      %p218 = por %p216, %p217
      %p219 = scmp.ne.s32.totalorder %s208, %s209
      %p220 = scmp.eq.s32.totalorder %s22, 0
      %p221 = por %p219, %p220
      %p222 = scmp.ne.s32.totalorder %s208, %s209
      %p223 = scmp.eq.s32.totalorder %s23, 1
      %p224 = por %p222, %p223
      %p226 = scmp.ne.s32.totalorder %s209, %s225
      %p227 = scmp.eq.s32.totalorder %s23, 0
      %p228 = por %p226, %p227
      %p229 = scmp.le.s32.totalorder 1, %s17
      %p230 = scmp.lt.s32.totalorder %s17, 3
      %p231 = pnand %p229, %p230
      %p232 = pneg %p231
      // Predicated region
      $region9: #{tpu_custom_call.1} parent=5 // pred_check
        _
      $region10: #{tpu_custom_call.1} parent=5 // pred_check_branch
        %234 = sbr.rel (%p231) target = $region12
      $region11: #{tpu_custom_call.1} parent=5 // pred_region
        %s235 = ssub.s32 %s17, 1
        // Predicated region
        $region13: #{tpu_custom_call.1} parent=11 // pred_check
          %p236 = pneg %p90
        $region14: #{tpu_custom_call.1} parent=11 // pred_check_branch
          %238 = sbr.rel (%p236) target = $region16
        $region15: #{tpu_custom_call.1} parent=11 // pred_region
          _
        $region16: #{tpu_custom_call.1} parent=11 // pred_fallthru
          _
        // Predicated region
        $region17: #{tpu_custom_call.1} parent=11 // pred_check
          %p239 = pneg %p111
        $region18: #{tpu_custom_call.1} parent=11 // pred_check_branch
          %241 = sbr.rel (%p239) target = $region20
        $region19: #{tpu_custom_call.1} parent=11 // pred_region
          _
        $region20: #{tpu_custom_call.1} parent=11 // pred_fallthru
          _
        // Predicated region
        $region21: #{tpu_custom_call.1} parent=11 // pred_check
          %p242 = pneg %p132
        $region22: #{tpu_custom_call.1} parent=11 // pred_check_branch
          %244 = sbr.rel (%p242) target = $region24
        $region23: #{tpu_custom_call.1} parent=11 // pred_region
          _
        $region24: #{tpu_custom_call.1} parent=11 // pred_fallthru
          _
        // Predicated region
        $region25: #{tpu_custom_call.1} parent=11 // pred_check
          %p245 = pneg %p153
        $region26: #{tpu_custom_call.1} parent=11 // pred_check_branch
          %247 = sbr.rel (%p245) target = $region28
        $region27: #{tpu_custom_call.1} parent=11 // pred_region
          _
        $region28: #{tpu_custom_call.1} parent=11 // pred_fallthru
          _
        // Predicated region
        $region29: #{tpu_custom_call.1} parent=11 // pred_check
          %p248 = pneg %p174
        $region30: #{tpu_custom_call.1} parent=11 // pred_check_branch
          %250 = sbr.rel (%p248) target = $region32
        $region31: #{tpu_custom_call.1} parent=11 // pred_region
          _
        $region32: #{tpu_custom_call.1} parent=11 // pred_fallthru
          _
        // Predicated region
        $region33: #{tpu_custom_call.1} parent=11 // pred_check
          %p251 = pneg %p195
        $region34: #{tpu_custom_call.1} parent=11 // pred_check_branch
          %253 = sbr.rel (%p251) target = $region36
        $region35: #{tpu_custom_call.1} parent=11 // pred_region
          _
        $region36: #{tpu_custom_call.1} parent=11 // pred_fallthru
          _
      $region12: #{tpu_custom_call.1} parent=5 // pred_fallthru
        _
      %p254 = scmp.lt.s32.totalorder %s17, 2
      // Predicated region
      $region37: #{tpu_custom_call.1} parent=5 // pred_check
        %p255 = pneg %p254
      $region38: #{tpu_custom_call.1} parent=5 // pred_check_branch
        %257 = sbr.rel (%p255) target = $region40
      $region39: #{tpu_custom_call.1} parent=5 // pred_region
        // Predicated region
        $region41: #{tpu_custom_call.1} parent=39 // pred_check
          %p258 = pneg %p37
        $region42: #{tpu_custom_call.1} parent=39 // pred_check_branch
          %260 = sbr.rel (%p258) target = $region44
        $region43: #{tpu_custom_call.1} parent=39 // pred_region
          %s261 = smul.u32 16, %s17
          %p262 = scmp.lt.s32.totalorder %s261, 31
          %s263 = scalar_select %p262, %s261, 31
          %s264 = smul.addr %s263, 2
          %s265 = smul.addr %s264, 4
          %s266 = scalar_lea.vmem %s0, %s265
          %s267 = smul.u32 16, %s17
        $region44: #{tpu_custom_call.1} parent=39 // pred_fallthru
          _
        // Predicated region
        $region45: #{tpu_custom_call.1} parent=39 // pred_check
          %p268 = pneg %p63
        $region46: #{tpu_custom_call.1} parent=39 // pred_check_branch
          %270 = sbr.rel (%p268) target = $region48
        $region47: #{tpu_custom_call.1} parent=39 // pred_region
          %s271 = smul.u32 16, %s17
          %p272 = scmp.lt.s32.totalorder %s271, 31
          %s273 = scalar_select %p272, %s271, 31
          %s274 = smul.addr %s273, 4
          %s275 = scalar_lea.vmem %s1, %s274
          %s276 = smul.u32 16, %s17
        $region48: #{tpu_custom_call.1} parent=39 // pred_fallthru
          _
      $region40: #{tpu_custom_call.1} parent=5 // pred_fallthru
        _
      %p277 = scmp.le.s32.totalorder 1, %s17
      %p278 = scmp.lt.s32.totalorder %s17, 3
      %p279 = pnand %p277, %p278
      %p280 = pneg %p279
      // Predicated region
      $region49: #{tpu_custom_call.1} parent=5 // pred_check
        _
      $region50: #{tpu_custom_call.1} parent=5 // pred_check_branch
        %282 = sbr.rel (%p279) target = $region52
      $region51: #{tpu_custom_call.1} parent=5 // pred_region
        %s283 = ssub.s32 %s17, 1
        %s284 = smul.u32 16, %s22
        %p285 = scmp.lt.s32.totalorder %s284, 31
        %s286 = scalar_select %p285, %s284, 31
        %s287 = smul.addr %s286, 2
        %s288 = smul.addr %s287, 4
        %s289 = scalar_lea.vmem %s0, %s288
        %p290 = pneg %p43
        %p291 = pneg %p40
        %s292 = smul.u32 16, %s22
        %p293 = scmp.lt.s32.totalorder %s292, 31
        %s294 = scalar_select %p293, %s292, 31
        %s295 = smul.addr %s294, 4
        %s296 = scalar_lea.vmem %s1, %s295
        %p297 = pneg %p69
        %p298 = pneg %p66
        %p299 = pneg %p90
        %p300 = pneg %p87
        %p301 = pneg %p111
        %p302 = pneg %p108
        %p303 = pneg %p132
        %p304 = pneg %p129
        %p305 = pneg %p153
        %p306 = pneg %p150
        %p307 = pneg %p174
        %p308 = pneg %p171
        %p309 = pneg %p195
        %p310 = pneg %p192
        %p311 = pneg %p221
        %p312 = pneg %p218
        %s313 = sand.u32 %s208, 1
        %s314 = scalar_lea.sflag [#allocation3], %s313
        %s315 = sand.u32 %s208, 1
        %s316 = smul.addr %s315, 64
        %s317 = scalar_lea.vmem [#allocation2], %s316
        %s318 = smul.u32 16, %s22
        %p319 = scmp.lt.s32.totalorder %s318, 31
        %s320 = scalar_select %p319, %s318, 31
        %s321 = smul.addr %s320, 2
        %s322 = smul.addr %s321, 4
        %s323 = scalar_lea.vmem %s0, %s322
        %s324 = smul.u32 16, %s22
        %s325 = smul.u32 16, %s22
        %p326 = scmp.lt.s32.totalorder %s325, 31
        %s327 = scalar_select %p326, %s325, 31
        %s328 = smul.addr %s327, 4
        %s329 = scalar_lea.vmem %s1, %s328
        %s330 = smul.u32 16, %s22
        %s331 = smul.u32 2, %s22
        %v333 = vld [vmem:[%s323] sm:$0xff]
        %v334 = vld [vmem:[%s323 + $0x8] sm:$0xff]
        %v335 = vld [vmem:[%s323 + $0x10] sm:$0xff]
        %v336 = vld [vmem:[%s323 + $0x18] sm:$0xff]
        %v337 = vld [vmem:[%s323 + $0x20] sm:$0xff]
        %v338 = vld [vmem:[%s323 + $0x28] sm:$0xff]
        %v339 = vld [vmem:[%s323 + $0x30] sm:$0xff]
        %v340 = vld [vmem:[%s323 + $0x38] sm:$0xff]
        %v341 = vld [vmem:[%s323 + $0x40] sm:$0xff]
        %v342 = vld [vmem:[%s323 + $0x48] sm:$0xff]
        %v343 = vld [vmem:[%s323 + $0x50] sm:$0xff]
        %v344 = vld [vmem:[%s323 + $0x58] sm:$0xff]
        %v345 = vld [vmem:[%s323 + $0x60] sm:$0xff]
        %v346 = vld [vmem:[%s323 + $0x68] sm:$0xff]
        %v347 = vld [vmem:[%s323 + $0x70] sm:$0xff]
        %v348 = vld [vmem:[%s323 + $0x78] sm:$0xff]
        %v349 = vld [vmem:[%s2] sm:$0xff]
        %v350 = vld [vmem:[%s2 + $0x8] sm:$0xff]
        %v351 = vld [vmem:[%s2 + $0x10] sm:$0xff]
        %v352 = vld [vmem:[%s2 + $0x18] sm:$0xff]
        %v353 = vld [vmem:[%s2 + $0x20] sm:$0xff]
        %v354 = vld [vmem:[%s2 + $0x28] sm:$0xff]
        %v355 = vld [vmem:[%s2 + $0x30] sm:$0xff]
        %v356 = vld [vmem:[%s2 + $0x38] sm:$0xff]
        %v357 = vld [vmem:[%s2 + $0x40] sm:$0xff]
        %v358 = vld [vmem:[%s2 + $0x48] sm:$0xff]
        %v359 = vld [vmem:[%s2 + $0x50] sm:$0xff]
        %v360 = vld [vmem:[%s2 + $0x58] sm:$0xff]
        %v361 = vld [vmem:[%s2 + $0x60] sm:$0xff]
        %v362 = vld [vmem:[%s2 + $0x68] sm:$0xff]
        %v363 = vld [vmem:[%s2 + $0x70] sm:$0xff]
        %v364 = vld [vmem:[%s2 + $0x78] sm:$0xff]
        %v365 = vld [vmem:[%s2 + $0x80] sm:$0xff]
        %v366 = vld [vmem:[%s2 + $0x88] sm:$0xff]
        %v367 = vld [vmem:[%s2 + $0x90] sm:$0xff]
        %v368 = vld [vmem:[%s2 + $0x98] sm:$0xff]
        %v369 = vld [vmem:[%s2 + $0xa0] sm:$0xff]
        %v370 = vld [vmem:[%s2 + $0xa8] sm:$0xff]
        %v371 = vld [vmem:[%s2 + $0xb0] sm:$0xff]
        %v372 = vld [vmem:[%s2 + $0xb8] sm:$0xff]
        %v373 = vld [vmem:[%s2 + $0xc0] sm:$0xff]
        %v374 = vld [vmem:[%s3] sm:$0x3]
        %v376 = vlaneseq
        %v377 = vshrl.u32 %v376, 7
        %v378 = vsub.s32 0, %v377
        %v379 = vrot.slane %v374, %v378
        %v380 = vlaneseq
        %v381 = vshrl.u32 %v380, 7
        %v382 = vsub.s32 1, %v381
        %v383 = vrot.slane %v374, %v382
        %v402 = vunpack.c.l.b16 %v333
        %v403 = vunpack.c.h.b16 %v333
        %v404 = vunpack.c.l.b16 %v334
        %v405 = vunpack.c.h.b16 %v334
        %v406 = vunpack.c.l.b16 %v335
        %v407 = vunpack.c.h.b16 %v335
        %v408 = vunpack.c.l.b16 %v336
        %v409 = vunpack.c.h.b16 %v336
        %v410 = vunpack.c.l.b16 %v337
        %v411 = vunpack.c.h.b16 %v337
        %v412 = vunpack.c.l.b16 %v338
        %v413 = vunpack.c.h.b16 %v338
        %v414 = vunpack.c.l.b16 %v339
        %v415 = vunpack.c.h.b16 %v339
        %v416 = vunpack.c.l.b16 %v340
        %v417 = vunpack.c.h.b16 %v340
        %v418 = vunpack.c.l.b16 %v341
        %v419 = vunpack.c.h.b16 %v341
        %v420 = vunpack.c.l.b16 %v342
        %v421 = vunpack.c.h.b16 %v342
        %v422 = vunpack.c.l.b16 %v343
        %v423 = vunpack.c.h.b16 %v343
        %v424 = vunpack.c.l.b16 %v344
        %v425 = vunpack.c.h.b16 %v344
        %v426 = vunpack.c.l.b16 %v345
        %v427 = vunpack.c.h.b16 %v345
        %v428 = vunpack.c.l.b16 %v346
        %v429 = vunpack.c.h.b16 %v346
        %v430 = vunpack.c.l.b16 %v347
        %v431 = vunpack.c.h.b16 %v347
        %v432 = vunpack.c.l.b16 %v348
        %v433 = vunpack.c.h.b16 %v348
        %v434 = vpack.c.b16 %v404, %v402
        %v435 = vpack.c.b16 %v405, %v403
        %v436 = vpack.c.b16 %v408, %v406
        %v437 = vpack.c.b16 %v409, %v407
        %v438 = vpack.c.b16 %v412, %v410
        %v439 = vpack.c.b16 %v413, %v411
        %v440 = vpack.c.b16 %v416, %v414
        %v441 = vpack.c.b16 %v417, %v415
        %v442 = vpack.c.b16 %v420, %v418
        %v443 = vpack.c.b16 %v421, %v419
        %v444 = vpack.c.b16 %v424, %v422
        %v445 = vpack.c.b16 %v425, %v423
        %v446 = vpack.c.b16 %v428, %v426
        %v447 = vpack.c.b16 %v429, %v427
        %v448 = vpack.c.b16 %v432, %v430
        %v449 = vpack.c.b16 %v433, %v431
        %v483 = vunpack.c.l.b16 %v349
        %v484 = vunpack.c.h.b16 %v349
        %v485 = vunpack.c.l.b16 %v350
        %v486 = vunpack.c.h.b16 %v350
        %v487 = vunpack.c.l.b16 %v351
        %v488 = vunpack.c.h.b16 %v351
        %v489 = vunpack.c.l.b16 %v352
        %v490 = vunpack.c.h.b16 %v352
        %v491 = vunpack.c.l.b16 %v353
        %v492 = vunpack.c.h.b16 %v353
        %v493 = vunpack.c.l.b16 %v354
        %v494 = vunpack.c.h.b16 %v354
        %v495 = vunpack.c.l.b16 %v355
        %v496 = vunpack.c.h.b16 %v355
        %v497 = vunpack.c.l.b16 %v356
        %v498 = vunpack.c.h.b16 %v356
        %v499 = vunpack.c.l.b16 %v357
        %v500 = vunpack.c.h.b16 %v357
        %v501 = vunpack.c.l.b16 %v358
        %v502 = vunpack.c.h.b16 %v358
        %v503 = vunpack.c.l.b16 %v359
        %v504 = vunpack.c.h.b16 %v359
        %v505 = vunpack.c.l.b16 %v360
        %v506 = vunpack.c.h.b16 %v360
        %v507 = vunpack.c.l.b16 %v361
        %v508 = vunpack.c.h.b16 %v361
        %v509 = vunpack.c.l.b16 %v362
        %v510 = vunpack.c.h.b16 %v362
        %v511 = vunpack.c.l.b16 %v363
        %v512 = vunpack.c.h.b16 %v363
        %v513 = vunpack.c.l.b16 %v364
        %v514 = vunpack.c.h.b16 %v364
        %v515 = vunpack.c.l.b16 %v365
        %v516 = vunpack.c.h.b16 %v365
        %v517 = vunpack.c.l.b16 %v366
        %v518 = vunpack.c.h.b16 %v366
        %v519 = vunpack.c.l.b16 %v367
        %v520 = vunpack.c.h.b16 %v367
        %v521 = vunpack.c.l.b16 %v368
        %v522 = vunpack.c.h.b16 %v368
        %v523 = vunpack.c.l.b16 %v369
        %v524 = vunpack.c.h.b16 %v369
        %v525 = vunpack.c.l.b16 %v370
        %v526 = vunpack.c.h.b16 %v370
        %v527 = vunpack.c.l.b16 %v371
        %v528 = vunpack.c.h.b16 %v371
        %v529 = vunpack.c.l.b16 %v372
        %v530 = vunpack.c.h.b16 %v372
        %v531 = vunpack.c.l.b16 %v373
        %v532 = vunpack.c.h.b16 %v373
        %v533 = vpack.c.b16 %v485, %v483
        %v534 = vpack.c.b16 %v486, %v484
        %v535 = vpack.c.b16 %v489, %v487
        %v536 = vpack.c.b16 %v490, %v488
        %v537 = vpack.c.b16 %v493, %v491
        %v538 = vpack.c.b16 %v494, %v492
        %v539 = vpack.c.b16 %v497, %v495
        %v540 = vpack.c.b16 %v498, %v496
        %v541 = vpack.c.b16 %v501, %v499
        %v542 = vpack.c.b16 %v502, %v500
        %v543 = vpack.c.b16 %v505, %v503
        %v544 = vpack.c.b16 %v506, %v504
        %v545 = vpack.c.b16 %v509, %v507
        %v546 = vpack.c.b16 %v510, %v508
        %v547 = vpack.c.b16 %v513, %v511
        %v548 = vpack.c.b16 %v514, %v512
        %v549 = vpack.c.b16 %v517, %v515
        %v550 = vpack.c.b16 %v518, %v516
        %v551 = vpack.c.b16 %v521, %v519
        %v552 = vpack.c.b16 %v522, %v520
        %v553 = vpack.c.b16 %v525, %v523
        %v554 = vpack.c.b16 %v526, %v524
        %v555 = vpack.c.b16 %v529, %v527
        %v556 = vpack.c.b16 %v530, %v528
        %v557 = vpack.c.b16 %v531, %v531
        %v558 = vpack.c.b16 %v532, %v532
        %vm572 = vcmask 588800
        %v574 = vsel %vm572, %v435, 0
        %v577 = vsel %vm572, %v437, 0
        %v580 = vsel %vm572, %v439, 0
        %v583 = vsel %vm572, %v441, 0
        %v586 = vsel %vm572, %v443, 0
        %v589 = vsel %vm572, %v445, 0
        %v592 = vsel %vm572, %v447, 0
        %v595 = vsel %vm572, %v449, 0
        %v598 = vsel %vm572, %v534, 0
        %v601 = vsel %vm572, %v536, 0
        %v604 = vsel %vm572, %v538, 0
        %v607 = vsel %vm572, %v540, 0
        %v610 = vsel %vm572, %v542, 0
        %v613 = vsel %vm572, %v544, 0
        %v616 = vsel %vm572, %v546, 0
        %v619 = vsel %vm572, %v548, 0
        %v622 = vsel %vm572, %v550, 0
        %v625 = vsel %vm572, %v552, 0
        %v628 = vsel %vm572, %v554, 0
        %v631 = vsel %vm572, %v556, 0
        %v634 = vsel %vm572, %v558, 0
        %636 = vmatprep.subr.bf16.mxu0 %v598
        %637 = vmatpush1.bf16.xpose.msra.mxu0 %v533
        %638 = vmatprep.subr.bf16.mxu0 %v601
        %639 = vmatpush1.bf16.xpose.msra.mxu0 %v535
        %640 = vmatprep.subr.bf16.mxu0 %v604
        %641 = vmatpush1.bf16.xpose.msra.mxu0 %v537
        %642 = vmatprep.subr.bf16.mxu0 %v607
        %643 = vmatpush1.bf16.xpose.msra.mxu0 %v539
        %644 = vmatprep.subr.bf16.mxu0 %v610
        %645 = vmatpush1.bf16.xpose.msra.mxu0 %v541
        %646 = vmatprep.subr.bf16.mxu0 %v613
        %647 = vmatpush1.bf16.xpose.msra.mxu0 %v543
        %648 = vmatprep.subr.bf16.mxu0 %v616
        %649 = vmatpush1.bf16.xpose.msra.mxu0 %v545
        %650 = vmatprep.subr.bf16.mxu0 %v619
        %651 = vmatpush1.bf16.xpose.msra.mxu0 %v547
        %652 = vmatprep.subr.bf16.mxu0 %v622
        %653 = vmatpush1.bf16.xpose.msra.mxu0 %v549
        %654 = vmatprep.subr.bf16.mxu0 %v625
        %655 = vmatpush1.bf16.xpose.msra.mxu0 %v551
        %656 = vmatprep.subr.bf16.mxu0 %v628
        %657 = vmatpush1.bf16.xpose.msra.mxu0 %v553
        %658 = vmatprep.subr.bf16.mxu0 %v631
        %659 = vmatpush1.bf16.xpose.msra.mxu0 %v555
        %660 = vmatprep.subr.bf16.mxu0 %v634
        %661 = vmatpush1.bf16.xpose.msra.mxu0 %v557
        %662 = vmatprep.subr.bf16.mxu0 0
        %663 = vmatpush1.bf16.xpose.msra.mxu0 0
        %664 = vmatprep.subr.bf16.mxu0 0
        %665 = vmatpush1.bf16.xpose.msra.mxu0 0
        %666 = vmatprep.subr.bf16.mxu0 0
        %667 = vmatpush1.bf16.xpose.msra.mxu0 0
        %668 = vmatprep.mubr.bf16.mxu0 %v574
        %669 = vmatmul.mubr.bf16.gmra.mrb[0].mxu0 %v434
        %v670 = vpop.f32.mrb[0].mxu0
        %v671 = vadd.f32 %v379, %v670
        %v672 = vpop.f32.mrb[0].mxu0
        %v673 = vadd.f32 %v383, %v672
        %v674 = vpop.f32.mrb[0].mxu0
        %v675 = vadd.f32 %v379, %v674
        %v676 = vpop.f32.mrb[0].mxu0
        %v677 = vadd.f32 %v383, %v676
        %678 = vmatprep.mubr.bf16.mxu0 %v577
        %679 = vmatmul.mubr.bf16.gmra.mrb[0].mxu0 %v436
        %v680 = vpop.f32.mrb[0].mxu0
        %v681 = vadd.f32 %v379, %v680
        %v682 = vpop.f32.mrb[0].mxu0
        %v683 = vadd.f32 %v383, %v682
        %v684 = vpop.f32.mrb[0].mxu0
        %v685 = vadd.f32 %v379, %v684
        %v686 = vpop.f32.mrb[0].mxu0
        %v687 = vadd.f32 %v383, %v686
        %688 = vmatprep.mubr.bf16.mxu0 %v580
        %689 = vmatmul.mubr.bf16.gmra.mrb[0].mxu0 %v438
        %v690 = vpop.f32.mrb[0].mxu0
        %v691 = vadd.f32 %v379, %v690
        %v692 = vpop.f32.mrb[0].mxu0
        %v693 = vadd.f32 %v383, %v692
        %v694 = vpop.f32.mrb[0].mxu0
        %v695 = vadd.f32 %v379, %v694
        %v696 = vpop.f32.mrb[0].mxu0
        %v697 = vadd.f32 %v383, %v696
        %698 = vmatprep.mubr.bf16.mxu0 %v583
        %699 = vmatmul.mubr.bf16.gmra.mrb[0].mxu0 %v440
        %v700 = vpop.f32.mrb[0].mxu0
        %v701 = vadd.f32 %v379, %v700
        %v702 = vpop.f32.mrb[0].mxu0
        %v703 = vadd.f32 %v383, %v702
        %v704 = vpop.f32.mrb[0].mxu0
        %v705 = vadd.f32 %v379, %v704
        %v706 = vpop.f32.mrb[0].mxu0
        %v707 = vadd.f32 %v383, %v706
        %708 = vmatprep.mubr.bf16.mxu0 %v586
        %709 = vmatmul.mubr.bf16.gmra.mrb[0].mxu0 %v442
        %v710 = vpop.f32.mrb[0].mxu0
        %v711 = vadd.f32 %v379, %v710
        %v712 = vpop.f32.mrb[0].mxu0
        %v713 = vadd.f32 %v383, %v712
        %v714 = vpop.f32.mrb[0].mxu0
        %v715 = vadd.f32 %v379, %v714
        %v716 = vpop.f32.mrb[0].mxu0
        %v717 = vadd.f32 %v383, %v716
        %718 = vmatprep.mubr.bf16.mxu0 %v589
        %719 = vmatmul.mubr.bf16.gmra.mrb[0].mxu0 %v444
        %v720 = vpop.f32.mrb[0].mxu0
        %v721 = vadd.f32 %v379, %v720
        %v722 = vpop.f32.mrb[0].mxu0
        %v723 = vadd.f32 %v383, %v722
        %v724 = vpop.f32.mrb[0].mxu0
        %v725 = vadd.f32 %v379, %v724
        %v726 = vpop.f32.mrb[0].mxu0
        %v727 = vadd.f32 %v383, %v726
        %728 = vmatprep.mubr.bf16.mxu0 %v592
        %729 = vmatmul.mubr.bf16.gmra.mrb[0].mxu0 %v446
        %v730 = vpop.f32.mrb[0].mxu0
        %v731 = vadd.f32 %v379, %v730
        %v732 = vpop.f32.mrb[0].mxu0
        %v733 = vadd.f32 %v383, %v732
        %v734 = vpop.f32.mrb[0].mxu0
        %v735 = vadd.f32 %v379, %v734
        %v736 = vpop.f32.mrb[0].mxu0
        %v737 = vadd.f32 %v383, %v736
        %738 = vmatprep.mubr.bf16.mxu0 %v595
        %739 = vmatmul.mubr.bf16.gmra.mrb[0].mxu0 %v448
        %v740 = vpop.f32.mrb[0].mxu0
        %v741 = vadd.f32 %v379, %v740
        %v742 = vpop.f32.mrb[0].mxu0
        %v743 = vadd.f32 %v383, %v742
        %v744 = vpop.f32.mrb[0].mxu0
        %v745 = vadd.f32 %v379, %v744
        %v746 = vpop.f32.mrb[0].mxu0
        %v747 = vadd.f32 %v383, %v746
        %748 = vdwg.mxu0
        %v749 = vld [vmem:[%s329] sm:$0xf]
        %v750 = vld [vmem:[%s329 + $0x4] sm:$0xf]
        %v751 = vld [vmem:[%s329 + $0x8] sm:$0xf]
        %v752 = vld [vmem:[%s329 + $0xc] sm:$0xf]
        %v753 = vld [vmem:[%s329 + $0x10] sm:$0xf]
        %v754 = vld [vmem:[%s329 + $0x14] sm:$0xf]
        %v755 = vld [vmem:[%s329 + $0x18] sm:$0xf]
        %v756 = vld [vmem:[%s329 + $0x1c] sm:$0xf]
        %v757 = vld [vmem:[%s329 + $0x20] sm:$0xf]
        %v758 = vld [vmem:[%s329 + $0x24] sm:$0xf]
        %v759 = vld [vmem:[%s329 + $0x28] sm:$0xf]
        %v760 = vld [vmem:[%s329 + $0x2c] sm:$0xf]
        %v761 = vld [vmem:[%s329 + $0x30] sm:$0xf]
        %v762 = vld [vmem:[%s329 + $0x34] sm:$0xf]
        %v763 = vld [vmem:[%s329 + $0x38] sm:$0xf]
        %v764 = vld [vmem:[%s329 + $0x3c] sm:$0xf]
        %v765 = vld [vmem:[%s4] sm:$0xf]
        %v766 = vld [vmem:[%s4 + $0x4] sm:$0xf]
        %v767 = vld [vmem:[%s4 + $0x8] sm:$0xf]
        %v768 = vld [vmem:[%s4 + $0xc] sm:$0xf]
        %v769 = vld [vmem:[%s4 + $0x10] sm:$0xf]
        %v770 = vld [vmem:[%s4 + $0x14] sm:$0xf]
        %v771 = vld [vmem:[%s4 + $0x18] sm:$0xf]
        %v772 = vld [vmem:[%s4 + $0x1c] sm:$0xf]
        %v773 = vld [vmem:[%s4 + $0x20] sm:$0xf]
        %v774 = vld [vmem:[%s4 + $0x24] sm:$0xf]
        %v775 = vld [vmem:[%s4 + $0x28] sm:$0xf]
        %v776 = vld [vmem:[%s4 + $0x2c] sm:$0xf]
        %v777 = vld [vmem:[%s4 + $0x30] sm:$0xf]
        %v778 = vld [vmem:[%s4 + $0x34] sm:$0xf]
        %v779 = vld [vmem:[%s4 + $0x38] sm:$0xf]
        %v780 = vld [vmem:[%s4 + $0x3c] sm:$0xf]
        %v781 = vld [vmem:[%s4 + $0x40] sm:$0xf]
        %v782 = vld [vmem:[%s4 + $0x44] sm:$0xf]
        %v783 = vld [vmem:[%s4 + $0x48] sm:$0xf]
        %v784 = vld [vmem:[%s4 + $0x4c] sm:$0xf]
        %v785 = vld [vmem:[%s4 + $0x50] sm:$0xf]
        %v786 = vld [vmem:[%s4 + $0x54] sm:$0xf]
        %v787 = vld [vmem:[%s4 + $0x58] sm:$0xf]
        %v788 = vld [vmem:[%s4 + $0x5c] sm:$0xf]
        %v789 = vld [vmem:[%s4 + $0x60] sm:$0xf]
        %v790 = vld [vmem:[%s5] sm:$0x3]
        %v792 = vlaneseq
        %v793 = vshrl.u32 %v792, 7
        %v794 = vsub.s32 0, %v793
        %v795 = vrot.slane %v790, %v794
        %v796 = vlaneseq
        %v797 = vshrl.u32 %v796, 7
        %v798 = vsub.s32 1, %v797
        %v799 = vrot.slane %v790, %v798
        %v818 = vunpack.c.l.b16 %v749
        %v819 = vunpack.c.l.b16 %v750
        %v820 = vunpack.c.l.b16 %v751
        %v821 = vunpack.c.l.b16 %v752
        %v822 = vunpack.c.l.b16 %v753
        %v823 = vunpack.c.l.b16 %v754
        %v824 = vunpack.c.l.b16 %v755
        %v825 = vunpack.c.l.b16 %v756
        %v826 = vunpack.c.l.b16 %v757
        %v827 = vunpack.c.l.b16 %v758
        %v828 = vunpack.c.l.b16 %v759
        %v829 = vunpack.c.l.b16 %v760
        %v830 = vunpack.c.l.b16 %v761
        %v831 = vunpack.c.l.b16 %v762
        %v832 = vunpack.c.l.b16 %v763
        %v833 = vunpack.c.l.b16 %v764
        %v834 = vpack.c.b16 %v819, %v818
        %v835 = vpack.c.b16 %v821, %v820
        %v836 = vpack.c.b16 %v823, %v822
        %v837 = vpack.c.b16 %v825, %v824
        %v838 = vpack.c.b16 %v827, %v826
        %v839 = vpack.c.b16 %v829, %v828
        %v840 = vpack.c.b16 %v831, %v830
        %v841 = vpack.c.b16 %v833, %v832
        %v867 = vunpack.c.l.b16 %v765
        %v868 = vunpack.c.l.b16 %v766
        %v869 = vunpack.c.l.b16 %v767
        %v870 = vunpack.c.l.b16 %v768
        %v871 = vunpack.c.l.b16 %v769
        %v872 = vunpack.c.l.b16 %v770
        %v873 = vunpack.c.l.b16 %v771
        %v874 = vunpack.c.l.b16 %v772
        %v875 = vunpack.c.l.b16 %v773
        %v876 = vunpack.c.l.b16 %v774
        %v877 = vunpack.c.l.b16 %v775
        %v878 = vunpack.c.l.b16 %v776
        %v879 = vunpack.c.l.b16 %v777
        %v880 = vunpack.c.l.b16 %v778
        %v881 = vunpack.c.l.b16 %v779
        %v882 = vunpack.c.l.b16 %v780
        %v883 = vunpack.c.l.b16 %v781
        %v884 = vunpack.c.l.b16 %v782
        %v885 = vunpack.c.l.b16 %v783
        %v886 = vunpack.c.l.b16 %v784
        %v887 = vunpack.c.l.b16 %v785
        %v888 = vunpack.c.l.b16 %v786
        %v889 = vunpack.c.l.b16 %v787
        %v890 = vunpack.c.l.b16 %v788
        %v891 = vunpack.c.l.b16 %v789
        %v892 = vpack.c.b16 %v868, %v867
        %v893 = vpack.c.b16 %v870, %v869
        %v894 = vpack.c.b16 %v872, %v871
        %v895 = vpack.c.b16 %v874, %v873
        %v896 = vpack.c.b16 %v876, %v875
        %v897 = vpack.c.b16 %v878, %v877
        %v898 = vpack.c.b16 %v880, %v879
        %v899 = vpack.c.b16 %v882, %v881
        %v900 = vpack.c.b16 %v884, %v883
        %v901 = vpack.c.b16 %v886, %v885
        %v902 = vpack.c.b16 %v888, %v887
        %v903 = vpack.c.b16 %v890, %v889
        %v904 = vpack.c.b16 %v891, %v891
        %vm905 = vcmask 162816
        %v907 = vsel %vm905, %v834, 0
        %v910 = vsel %vm905, %v835, 0
        %v913 = vsel %vm905, %v836, 0
        %v916 = vsel %vm905, %v837, 0
        %v919 = vsel %vm905, %v838, 0
        %v922 = vsel %vm905, %v839, 0
        %v925 = vsel %vm905, %v840, 0
        %v928 = vsel %vm905, %v841, 0
        %v931 = vsel %vm905, %v892, 0
        %v934 = vsel %vm905, %v893, 0
        %v937 = vsel %vm905, %v894, 0
        %v940 = vsel %vm905, %v895, 0
        %v943 = vsel %vm905, %v896, 0
        %v946 = vsel %vm905, %v897, 0
        %v949 = vsel %vm905, %v898, 0
        %v952 = vsel %vm905, %v899, 0
        %v955 = vsel %vm905, %v900, 0
        %v958 = vsel %vm905, %v901, 0
        %v961 = vsel %vm905, %v902, 0
        %v964 = vsel %vm905, %v903, 0
        %v967 = vsel %vm905, %v904, 0
        %969 = vmatprep.subr.bf16.mxu0 0
        %970 = vmatpush1.bf16.xpose.msra.mxu0 %v931
        %971 = vmatprep.subr.bf16.mxu0 0
        %972 = vmatpush1.bf16.xpose.msra.mxu0 %v934
        %973 = vmatprep.subr.bf16.mxu0 0
        %974 = vmatpush1.bf16.xpose.msra.mxu0 %v937
        %975 = vmatprep.subr.bf16.mxu0 0
        %976 = vmatpush1.bf16.xpose.msra.mxu0 %v940
        %977 = vmatprep.subr.bf16.mxu0 0
        %978 = vmatpush1.bf16.xpose.msra.mxu0 %v943
        %979 = vmatprep.subr.bf16.mxu0 0
        %980 = vmatpush1.bf16.xpose.msra.mxu0 %v946
        %981 = vmatprep.subr.bf16.mxu0 0
        %982 = vmatpush1.bf16.xpose.msra.mxu0 %v949
        %983 = vmatprep.subr.bf16.mxu0 0
        %984 = vmatpush1.bf16.xpose.msra.mxu0 %v952
        %985 = vmatprep.subr.bf16.mxu0 0
        %986 = vmatpush1.bf16.xpose.msra.mxu0 %v955
        %987 = vmatprep.subr.bf16.mxu0 0
        %988 = vmatpush1.bf16.xpose.msra.mxu0 %v958
        %989 = vmatprep.subr.bf16.mxu0 0
        %990 = vmatpush1.bf16.xpose.msra.mxu0 %v961
        %991 = vmatprep.subr.bf16.mxu0 0
        %992 = vmatpush1.bf16.xpose.msra.mxu0 %v964
        %993 = vmatprep.subr.bf16.mxu0 0
        %994 = vmatpush1.bf16.xpose.msra.mxu0 %v967
        %995 = vmatprep.subr.bf16.mxu0 0
        %996 = vmatpush1.bf16.xpose.msra.mxu0 0
        %997 = vmatprep.subr.bf16.mxu0 0
        %998 = vmatpush1.bf16.xpose.msra.mxu0 0
        %999 = vmatprep.subr.bf16.mxu0 0
        %1000 = vmatpush1.bf16.xpose.msra.mxu0 0
        %1001 = vmatprep.mubr.bf16.mxu0 0
        %1002 = vmatmul.mubr.bf16.gmra.mrb[0].mxu0 %v907
        %v1003 = vpop.f32.mrb[0].mxu0
        %v1004 = vadd.f32 %v795, %v1003
        %v1005 = vpop.f32.mrb[0].mxu0
        %v1006 = vadd.f32 %v799, %v1005
        %v1007 = vpop.f32.mrb[0].mxu0
        %v1008 = vadd.f32 %v795, %v1007
        %v1009 = vpop.f32.mrb[0].mxu0
        %v1010 = vadd.f32 %v799, %v1009
        %1011 = vmatprep.mubr.bf16.mxu0 0
        %1012 = vmatmul.mubr.bf16.gmra.mrb[0].mxu0 %v910
        %v1013 = vpop.f32.mrb[0].mxu0
        %v1014 = vadd.f32 %v795, %v1013
        %v1015 = vpop.f32.mrb[0].mxu0
        %v1016 = vadd.f32 %v799, %v1015
        %v1017 = vpop.f32.mrb[0].mxu0
        %v1018 = vadd.f32 %v795, %v1017
        %v1019 = vpop.f32.mrb[0].mxu0
        %v1020 = vadd.f32 %v799, %v1019
        %1021 = vmatprep.mubr.bf16.mxu0 0
        %1022 = vmatmul.mubr.bf16.gmra.mrb[0].mxu0 %v913
        %v1023 = vpop.f32.mrb[0].mxu0
        %v1024 = vadd.f32 %v795, %v1023
        %v1025 = vpop.f32.mrb[0].mxu0
        %v1026 = vadd.f32 %v799, %v1025
        %v1027 = vpop.f32.mrb[0].mxu0
        %v1028 = vadd.f32 %v795, %v1027
        %v1029 = vpop.f32.mrb[0].mxu0
        %v1030 = vadd.f32 %v799, %v1029
        %1031 = vmatprep.mubr.bf16.mxu0 0
        %1032 = vmatmul.mubr.bf16.gmra.mrb[0].mxu0 %v916
        %v1033 = vpop.f32.mrb[0].mxu0
        %v1034 = vadd.f32 %v795, %v1033
        %v1035 = vpop.f32.mrb[0].mxu0
        %v1036 = vadd.f32 %v799, %v1035
        %v1037 = vpop.f32.mrb[0].mxu0
        %v1038 = vadd.f32 %v795, %v1037
        %v1039 = vpop.f32.mrb[0].mxu0
        %v1040 = vadd.f32 %v799, %v1039
        %1041 = vmatprep.mubr.bf16.mxu0 0
        %1042 = vmatmul.mubr.bf16.gmra.mrb[0].mxu0 %v919
        %v1043 = vpop.f32.mrb[0].mxu0
        %v1044 = vadd.f32 %v795, %v1043
        %v1045 = vpop.f32.mrb[0].mxu0
        %v1046 = vadd.f32 %v799, %v1045
        %v1047 = vpop.f32.mrb[0].mxu0
        %v1048 = vadd.f32 %v795, %v1047
        %v1049 = vpop.f32.mrb[0].mxu0
        %v1050 = vadd.f32 %v799, %v1049
        %1051 = vmatprep.mubr.bf16.mxu0 0
        %1052 = vmatmul.mubr.bf16.gmra.mrb[0].mxu0 %v922
        %v1053 = vpop.f32.mrb[0].mxu0
        %v1054 = vadd.f32 %v795, %v1053
        %v1055 = vpop.f32.mrb[0].mxu0
        %v1056 = vadd.f32 %v799, %v1055
        %v1057 = vpop.f32.mrb[0].mxu0
        %v1058 = vadd.f32 %v795, %v1057
        %v1059 = vpop.f32.mrb[0].mxu0
        %v1060 = vadd.f32 %v799, %v1059
        %1061 = vmatprep.mubr.bf16.mxu0 0
        %1062 = vmatmul.mubr.bf16.gmra.mrb[0].mxu0 %v925
        %v1063 = vpop.f32.mrb[0].mxu0
        %v1064 = vadd.f32 %v795, %v1063
        %v1065 = vpop.f32.mrb[0].mxu0
        %v1066 = vadd.f32 %v799, %v1065
        %v1067 = vpop.f32.mrb[0].mxu0
        %v1068 = vadd.f32 %v795, %v1067
        %v1069 = vpop.f32.mrb[0].mxu0
        %v1070 = vadd.f32 %v799, %v1069
        %1071 = vmatprep.mubr.bf16.mxu0 0
        %1072 = vmatmul.mubr.bf16.gmra.mrb[0].mxu0 %v928
        %v1073 = vpop.f32.mrb[0].mxu0
        %v1074 = vadd.f32 %v795, %v1073
        %v1075 = vpop.f32.mrb[0].mxu0
        %v1076 = vadd.f32 %v799, %v1075
        %v1077 = vpop.f32.mrb[0].mxu0
        %v1078 = vadd.f32 %v795, %v1077
        %v1079 = vpop.f32.mrb[0].mxu0
        %v1080 = vadd.f32 %v799, %v1079
        %1081 = vdwg.mxu0
        %v1082 = vmul.f32 %v671, %v1004
        %v1083 = vmul.f32 %v673, %v1006
        %v1084 = vmul.f32 %v675, %v1008
        %v1085 = vmul.f32 %v677, %v1010
        %v1086 = vmul.f32 %v681, %v1014
        %v1087 = vmul.f32 %v683, %v1016
        %v1088 = vmul.f32 %v685, %v1018
        %v1089 = vmul.f32 %v687, %v1020
        %v1090 = vmul.f32 %v691, %v1024
        %v1091 = vmul.f32 %v693, %v1026
        %v1092 = vmul.f32 %v695, %v1028
        %v1093 = vmul.f32 %v697, %v1030
        %v1094 = vmul.f32 %v701, %v1034
        %v1095 = vmul.f32 %v703, %v1036
        %v1096 = vmul.f32 %v705, %v1038
        %v1097 = vmul.f32 %v707, %v1040
        %v1098 = vmul.f32 %v711, %v1044
        %v1099 = vmul.f32 %v713, %v1046
        %v1100 = vmul.f32 %v715, %v1048
        %v1101 = vmul.f32 %v717, %v1050
        %v1102 = vmul.f32 %v721, %v1054
        %v1103 = vmul.f32 %v723, %v1056
        %v1104 = vmul.f32 %v725, %v1058
        %v1105 = vmul.f32 %v727, %v1060
        %v1106 = vmul.f32 %v731, %v1064
        %v1107 = vmul.f32 %v733, %v1066
        %v1108 = vmul.f32 %v735, %v1068
        %v1109 = vmul.f32 %v737, %v1070
        %v1110 = vmul.f32 %v741, %v1074
        %v1111 = vmul.f32 %v743, %v1076
        %v1112 = vmul.f32 %v745, %v1078
        %v1113 = vmul.f32 %v747, %v1080
        %v1114 = vpack.c.bf16 %v1084, %v1082
        %v1115 = vpack.c.bf16 %v1085, %v1083
        %v1116 = vpack.c.bf16 %v1088, %v1086
        %v1117 = vpack.c.bf16 %v1089, %v1087
        %v1118 = vpack.c.bf16 %v1092, %v1090
        %v1119 = vpack.c.bf16 %v1093, %v1091
        %v1120 = vpack.c.bf16 %v1096, %v1094
        %v1121 = vpack.c.bf16 %v1097, %v1095
        %v1122 = vpack.c.bf16 %v1100, %v1098
        %v1123 = vpack.c.bf16 %v1101, %v1099
        %v1124 = vpack.c.bf16 %v1104, %v1102
        %v1125 = vpack.c.bf16 %v1105, %v1103
        %v1126 = vpack.c.bf16 %v1108, %v1106
        %v1127 = vpack.c.bf16 %v1109, %v1107
        %v1128 = vpack.c.bf16 %v1112, %v1110
        %v1129 = vpack.c.bf16 %v1113, %v1111
        %v1130 = vld [vmem:[%s6] sm:$0xf]
        %v1131 = vld [vmem:[%s6 + $0x4] sm:$0xf]
        %v1132 = vld [vmem:[%s7] sm:$0xff]
        %v1133 = vld [vmem:[%s7 + $0x8] sm:$0xff]
        %1135 = vset.pattern.permute.xlu0 0
        %1136 = vperm.xlu0 %1135, %v1132
        %v1137 = vpop.permute.xlu0 %1136
        %1140 = vset.pattern.permute.xlu0 0
        %1141 = vperm.xlu0 %1140, %v1133
        %v1142 = vpop.permute.xlu0 %1141
        %v1146 = vunpack.c.l.b16 %v1130
        %v1147 = vunpack.c.l.b16 %v1131
        %v1148 = vpack.c.b16 %v1147, %v1146
        %vm1149 = vcmask 523264
        %v1151 = vsel %vm1149, %v1148, 0
        %1153 = vmatprep.subr.bf16.mxu0 %v1115
        %1154 = vmatpush1.bf16.msra.mxu0 %v1114
        %1155 = vmatprep.subr.bf16.mxu0 %v1117
        %1156 = vmatpush1.bf16.msra.mxu0 %v1116
        %1157 = vmatprep.subr.bf16.mxu0 %v1119
        %1158 = vmatpush1.bf16.msra.mxu0 %v1118
        %1159 = vmatprep.subr.bf16.mxu0 %v1121
        %1160 = vmatpush1.bf16.msra.mxu0 %v1120
        %1161 = vmatprep.subr.bf16.mxu0 0
        %1162 = vmatpush1.bf16.msra.mxu0 0
        %1163 = vmatprep.subr.bf16.mxu0 0
        %1164 = vmatpush1.bf16.msra.mxu0 0
        %1165 = vmatprep.subr.bf16.mxu0 0
        %1166 = vmatpush1.bf16.msra.mxu0 0
        %1167 = vmatprep.subr.bf16.mxu0 0
        %1168 = vmatpush1.bf16.msra.mxu0 0
        %1169 = vmatprep.subr.bf16.mxu0 0
        %1170 = vmatpush1.bf16.msra.mxu0 0
        %1171 = vmatprep.subr.bf16.mxu0 0
        %1172 = vmatpush1.bf16.msra.mxu0 0
        %1173 = vmatprep.subr.bf16.mxu0 0
        %1174 = vmatpush1.bf16.msra.mxu0 0
        %1175 = vmatprep.subr.bf16.mxu0 0
        %1176 = vmatpush1.bf16.msra.mxu0 0
        %1177 = vmatprep.subr.bf16.mxu0 0
        %1178 = vmatpush1.bf16.msra.mxu0 0
        %1179 = vmatprep.subr.bf16.mxu0 0
        %1180 = vmatpush1.bf16.msra.mxu0 0
        %1181 = vmatprep.subr.bf16.mxu0 0
        %1182 = vmatpush1.bf16.msra.mxu0 0
        %1183 = vmatprep.subr.bf16.mxu0 0
        %1184 = vmatpush1.bf16.msra.mxu0 0
        %1185 = vmatprep.mubr.bf16.mxu0 0
        %1186 = vmatmul.mubr.bf16.gmra.mrb[0].mxu0 %v1151
        %v1187 = vpop.f32.mrb[0].mxu0
        %v1188 = vadd.f32 %v1137, %v1187
        %v1189 = vpop.f32.mrb[0].mxu0
        %v1190 = vadd.f32 %v1137, %v1189
        %v1191 = vpop.f32.mrb[0].mxu0
        %v1192 = vadd.f32 %v1142, %v1191
        %v1193 = vpop.f32.mrb[0].mxu0
        %v1194 = vadd.f32 %v1142, %v1193
        %1195 = vdwg.mxu0
        %1196 = vst [vmem:[%s317] sm:$0xff] %v1188
        %1197 = vst.msk [vmem:[%s317 + $0x8] sm:$0xff] %vm572, %v1190
        %1198 = vst [vmem:[%s317 + $0x10] sm:$0xff] %v1192
        %1199 = vst.msk [vmem:[%s317 + $0x18] sm:$0xff] %vm572, %v1194
        %1200 = vmatprep.subr.bf16.mxu0 %v1123
        %1201 = vmatpush1.bf16.msra.mxu0 %v1122
        %1202 = vmatprep.subr.bf16.mxu0 %v1125
        %1203 = vmatpush1.bf16.msra.mxu0 %v1124
        %1204 = vmatprep.subr.bf16.mxu0 %v1127
        %1205 = vmatpush1.bf16.msra.mxu0 %v1126
        %1206 = vmatprep.subr.bf16.mxu0 %v1129
        %1207 = vmatpush1.bf16.msra.mxu0 %v1128
        %1208 = vmatprep.subr.bf16.mxu0 0
        %1209 = vmatpush1.bf16.msra.mxu0 0
        %1210 = vmatprep.subr.bf16.mxu0 0
        %1211 = vmatpush1.bf16.msra.mxu0 0
        %1212 = vmatprep.subr.bf16.mxu0 0
        %1213 = vmatpush1.bf16.msra.mxu0 0
        %1214 = vmatprep.subr.bf16.mxu0 0
        %1215 = vmatpush1.bf16.msra.mxu0 0
        %1216 = vmatprep.subr.bf16.mxu0 0
        %1217 = vmatpush1.bf16.msra.mxu0 0
        %1218 = vmatprep.subr.bf16.mxu0 0
        %1219 = vmatpush1.bf16.msra.mxu0 0
        %1220 = vmatprep.subr.bf16.mxu0 0
        %1221 = vmatpush1.bf16.msra.mxu0 0
        %1222 = vmatprep.subr.bf16.mxu0 0
        %1223 = vmatpush1.bf16.msra.mxu0 0
        %1224 = vmatprep.subr.bf16.mxu0 0
        %1225 = vmatpush1.bf16.msra.mxu0 0
        %1226 = vmatprep.subr.bf16.mxu0 0
        %1227 = vmatpush1.bf16.msra.mxu0 0
        %1228 = vmatprep.subr.bf16.mxu0 0
        %1229 = vmatpush1.bf16.msra.mxu0 0
        %1230 = vmatprep.subr.bf16.mxu0 0
        %1231 = vmatpush1.bf16.msra.mxu0 0
        %1232 = vmatprep.mubr.bf16.mxu0 0
        %1233 = vmatmul.mubr.bf16.gmra.mrb[0].mxu0 %v1151
        %v1234 = vpop.f32.mrb[0].mxu0
        %v1235 = vadd.f32 %v1137, %v1234
        %v1236 = vpop.f32.mrb[0].mxu0
        %v1237 = vadd.f32 %v1137, %v1236
        %v1238 = vpop.f32.mrb[0].mxu0
        %v1239 = vadd.f32 %v1142, %v1238
        %v1240 = vpop.f32.mrb[0].mxu0
        %v1241 = vadd.f32 %v1142, %v1240
        %1242 = vdwg.mxu0
        %s1243 = scalar_lea.vmem %s317, 32 [#allocation2]
        %1244 = vst [vmem:[%s1243] sm:$0xff] %v1235
        %1245 = vst.msk [vmem:[%s1243 + $0x8] sm:$0xff] %vm572, %v1237
        %1246 = vst [vmem:[%s1243 + $0x10] sm:$0xff] %v1239
        %1247 = vst.msk [vmem:[%s1243 + $0x18] sm:$0xff] %vm572, %v1241
        %s1248 = sand.u32 %s208, 1
        %s1249 = scalar_lea.sflag [#allocation3], %s1248
        %s1250 = sand.u32 %s208, 1
        %s1251 = smul.addr %s1250, 64
        %s1252 = scalar_lea.vmem [#allocation2], %s1251
        // Predicated region
        $region53: #{tpu_custom_call.1} parent=51 // pred_check
          %p1253 = pneg %p218
        $region54: #{tpu_custom_call.1} parent=51 // pred_check_branch
          %1255 = sbr.rel (%p1253) target = $region56
        $region55: #{tpu_custom_call.1} parent=51 // pred_region
          %s1256 = smul.u32 2, %s22
          %s1258 = ssub.s32 1024, 1024
          %1259 = vsyncadd %s1249, %s1258
          %s1260 = smul.addr %s1256, 4
          %s1261 = smul.addr %s1260, 128
          %s1262 = scalar_lea.hbm %s8, %s1261
          %s1263 = sshll.u32 %s1252, 4
          %s1264 = int_to_ptr.vmem [resolvable:$true] %s1263
          %1269 = dma.vmem_to_hbm [thread:$0]  %s1264, 1024, %s1262, %s1249, 256, 256, 16
        $region56: #{tpu_custom_call.1} parent=51 // pred_fallthru
          _
      $region52: #{tpu_custom_call.1} parent=5 // pred_fallthru
        _
      %p1270 = scmp.le.s32.totalorder 2, %s17
      // Predicated region
      $region57: #{tpu_custom_call.1} parent=5 // pred_check
        %p1271 = pneg %p1270
      $region58: #{tpu_custom_call.1} parent=5 // pred_check_branch
        %1273 = sbr.rel (%p1271) target = $region60
      $region59: #{tpu_custom_call.1} parent=5 // pred_region
        %s1274 = ssub.s32 %s17, 2
        // Predicated region
        $region61: #{tpu_custom_call.1} parent=59 // pred_check
          %p1275 = pneg %p224
        $region62: #{tpu_custom_call.1} parent=59 // pred_check_branch
          %1277 = sbr.rel (%p1275) target = $region64
        $region63: #{tpu_custom_call.1} parent=59 // pred_region
          %s1278 = sand.u32 %s209, 1
          %s1279 = scalar_lea.sflag [#allocation3], %s1278
          %s1280 = sand.u32 %s209, 1
          %s1281 = smul.addr %s1280, 64
          %s1282 = scalar_lea.vmem [#allocation2], %s1281
          %1283 = dma.done %s1279, 1024
        $region64: #{tpu_custom_call.1} parent=59 // pred_fallthru
          _
      $region60: #{tpu_custom_call.1} parent=5 // pred_fallthru
        _
    $region6: #{tpu_custom_call.1} parent=1 // loop_footer
      %s21 = sadd.s32 1, %s17
    $region7: #{tpu_custom_call.1} parent=1 // loop_footer_branch
      %16 = sbr.rel target = $region3
    $region8: #{tpu_custom_call.1} parent=1 // loop_exit
      _
    %1284 = vsyncpa [#allocation3], 1
    %s1285 = scalar_lea.sflag [#allocation3], 1
    %1286 = vsyncpa %s1285, 1

</llo_original>
